<compile_context>
chip_gen: v7x
topology: tpu7x:2x2x1
jax: 0.10.0
libtpu: 0.0.40
codegen_flags: <defaults>
</compile_context>

<pallas_src>
import functools
import math

import jax
import jax.numpy as jnp
from jax import lax
from jax.experimental import pallas as pl
from jax.experimental.pallas import tpu as pltpu


LN_EPS = 1e-5  # torch.nn.LayerNorm default eps


# ----------------------------------------------------------------------------
# Exact-erf GELU.  Abramowitz&Stegun 7.1.26 rational approximation of erf
# (max abs err ~1.5e-7, i.e. at f32 rounding level) built only from
# exp / mul / add so it is guaranteed to lower in Mosaic (EUP + VPU).
# ----------------------------------------------------------------------------
def _erf_in_kernel(x):
    a1, a2, a3, a4, a5 = (0.254829592, -0.284496736, 1.421413741,
                          -1.453152027, 1.061405429)
    p = 0.3275911
    sgn = jnp.where(x < 0.0, -1.0, 1.0)
    ax = jnp.abs(x)
    t = 1.0 / (1.0 + p * ax)
    poly = ((((a5 * t + a4) * t + a3) * t + a2) * t + a1) * t
    return sgn * (1.0 - poly * jnp.exp(-ax * ax))


def _gelu_in_kernel(x):
    return 0.5 * x * (1.0 + _erf_in_kernel(x * (1.0 / math.sqrt(2.0))))


def _gelu_ref(x):  # reference path (plain XLA) uses the exact erf primitive
    return 0.5 * x * (1.0 + lax.erf(x * (1.0 / math.sqrt(2.0))))


# ----------------------------------------------------------------------------
# Fused kernel: one (batch b, time-tile j) grid step.
#   x_ref : (1, 1, S, Cin, TTQ)   polyphase slab, slab[r, ci, u] = x[ci, (t0+u)*S + r]
#   w_ref : (Cout, Cin*K)         weight, column index = k*Cin + ci
#   b_ref, g_ref, be_ref : (Cout, 1)   conv bias, LN gamma, LN beta (f32)
#   o_ref : (1, Cout, TT)         output tile, time on the 128-lane axis
# ----------------------------------------------------------------------------
def _conv_ln_gelu_kernel(x_ref, w_ref, b_ref, g_ref, be_ref, o_ref, *,
                         stride, ksize, tt, eps):
    # In-kernel im2col: K static contiguous slices of the slab, concatenated on
    # the sublane axis.  x[ci, t*S + k] == slab[r, ci, t + q] with (q, r) = divmod(k, S).
    cols = []
    for k in range(ksize):                                    # small static unroll
        q, r = divmod(k, stride)
        cols.append(x_ref[0, 0, r, :, pl.ds(q, tt)])          # (Cin, TT), contiguous
    patch = cols[0] if ksize == 1 else jnp.concatenate(cols, axis=0)  # (Cin*K, TT)

    # Conv1d as a single MXU matmul, f32 accumulation.
    acc = jnp.dot(w_ref[...], patch, preferred_element_type=jnp.float32)  # (Cout, TT)
    acc = acc + b_ref[...]                                    # bias (Cout,1) broadcast

    # LayerNorm over channels (sublane axis), per time position, in f32.
    mean = jnp.mean(acc, axis=0, keepdims=True)               # (1, TT)
    cen = acc - mean
    var = jnp.mean(cen * cen, axis=0, keepdims=True)
    y = cen * lax.rsqrt(var + eps)
    y = y * g_ref[...] + be_ref[...]

    # Exact-erf GELU fused in-kernel; lane-dense store.
    o_ref[0] = _gelu_in_kernel(y).astype(o_ref.dtype)


# ----------------------------------------------------------------------------
# Wrapper: gather-free polyphase + time-tiled slab construction and pallas_call.
# ----------------------------------------------------------------------------
def wavlm_layernorm_conv_layer(hidden_states, params, *, stride, tt=512,
                               compute_dtype=jnp.float32):
    x = hidden_states                          # (B, Cin, T) NCL (PyTorch layout)
    w = params["conv_weight"]                  # (Cout, Cin, K)
    bias = params.get("conv_bias")             # (Cout,) or None (conv_bias=False)
    gamma, beta = params["ln_weight"], params["ln_bias"]

    B, cin, T = x.shape
    cout, _, K = w.shape
    S = int(stride)
    t_out = (T - K) // S + 1
    assert t_out >= 1, "input too short for the conv kernel"

    q_extra = (K - 1) // S                     # halo (in output positions) per tile
    if t_out <= tt or q_extra > tt:            # small problem (or degenerate halo):
        tt = t_out                             # single full tile, no padding needed
    nt = -(-t_out // tt)                       # ceil-div: number of time tiles
    t_pad = nt * tt                            # padded output length (sliced at end)
    ttq = tt + q_extra
    L0 = (t_pad + q_extra) * S                 # raw samples needed by the slabs

    # Fit the raw input to exactly L0 samples (pad with zeros or trim the tail).
    if T >= L0:
        x_fit = x[:, :, :L0]
    else:
        x_fit = jnp.pad(x, ((0, 0), (0, 0), (0, L0 - T)))
    x_fit = x_fit.astype(compute_dtype)

    # Gather-free polyphase slab:
    #   slabs[b, j, r, ci, u] = x[b, ci, (j*tt + u)*S + r],   u in [0, ttq)
    x_r = x_fit.reshape(B, cin, t_pad + q_extra, S)           # [..., m, r] = x[..., m*S+r]
    main = x_r[:, :, :t_pad, :].reshape(B, cin, nt, tt, S)    # u in [0, tt)
    if q_extra == 0:
        slab5 = main
    elif nt == 1:
        halo = x_r[:, :, tt:, :].reshape(B, cin, 1, q_extra, S)
        slab5 = jnp.concatenate([main, halo], axis=3)
    else:
        # halo[b,ci,j,u',r] = x_r[b,ci,(j+1)*tt + u', r],  u' in [0, q_extra)
        tail = x_r[:, :, tt:, :]                              # ((nt-1)*tt + q_extra, S)
        tail = jnp.pad(tail, ((0, 0), (0, 0), (0, tt - q_extra), (0, 0)))
        halo = tail.reshape(B, cin, nt, tt, S)[:, :, :, :q_extra, :]
        slab5 = jnp.concatenate([main, halo], axis=3)         # (B, cin, nt, ttq, S)
    slabs = jnp.transpose(slab5, (0, 2, 4, 1, 3))             # (B, nt, S, cin, ttq)

    # Weight as (Cout, K*Cin) with column index k*Cin + ci (matches in-kernel concat).
    w2d = jnp.transpose(w, (0, 2, 1)).reshape(cout, cin * K).astype(compute_dtype)

    b_col = (bias if bias is not None
             else jnp.zeros((cout,), jnp.float32)).astype(jnp.float32).reshape(cout, 1)
    g_col = gamma.astype(jnp.float32).reshape(cout, 1)
    be_col = beta.astype(jnp.float32).reshape(cout, 1)

    kernel = functools.partial(_conv_ln_gelu_kernel, stride=S, ksize=K, tt=tt,
                               eps=LN_EPS)

    out_padded = pl.pallas_call(
        kernel,
        out_shape=jax.ShapeDtypeStruct((B, cout, t_pad), jnp.float32),
        grid=(B, nt),
        in_specs=[
            pl.BlockSpec((1, 1, S, cin, ttq), lambda b, j: (b, j, 0, 0, 0)),
            pl.BlockSpec((cout, cin * K), lambda b, j: (0, 0)),   # resident weights
            pl.BlockSpec((cout, 1), lambda b, j: (0, 0)),         # resident bias
            pl.BlockSpec((cout, 1), lambda b, j: (0, 0)),         # resident LN gamma
            pl.BlockSpec((cout, 1), lambda b, j: (0, 0)),         # resident LN beta
        ],
        out_specs=pl.BlockSpec((1, cout, tt), lambda b, j: (b, 0, j)),
        compiler_params=pltpu.CompilerParams(
            dimension_semantics=("parallel", "parallel"),
            vmem_limit_bytes=32 * 1024 * 1024,   # fits v7x (64 MiB phys) and v5e/v6e
        ),
    )(slabs, w2d, b_col, g_col, be_col)

    return out_padded if t_pad == t_out else out_padded[:, :, :t_out]


# ----------------------------------------------------------------------------
# Pure-JAX reference mirroring the PyTorch forward, for the correctness check.
# ----------------------------------------------------------------------------
def reference(hidden_states, params, *, stride):
    h = lax.conv_general_dilated(hidden_states, params["conv_weight"], (stride,),
                                 "VALID", dimension_numbers=("NCH", "OIH", "NCH"),
                                 precision=lax.Precision.HIGHEST)
    if params.get("conv_bias") is not None:
        h = h + params["conv_bias"][None, :, None]
    ht = jnp.transpose(h, (0, 2, 1))                       # (B, T_out, C_out)
    mean = jnp.mean(ht, axis=-1, keepdims=True)
    var = jnp.mean((ht - mean) ** 2, axis=-1, keepdims=True)
    ht = (ht - mean) * lax.rsqrt(var + LN_EPS)
    ht = ht * params["ln_weight"] + params["ln_bias"]
    h = jnp.transpose(ht, (0, 2, 1))                       # back to (B, C_out, T_out)
    return _gelu_ref(h)


def _make_params(key, cin, cout, k):
    k_w, k_b, k_g, k_be = jax.random.split(key, 4)
    return {
        "conv_weight": jax.random.normal(k_w, (cout, cin, k), jnp.float32)
                       / math.sqrt(cin * k),
        "conv_bias": 0.1 * jax.random.normal(k_b, (cout,), jnp.float32),
        "ln_weight": 1.0 + 0.1 * jax.random.normal(k_g, (cout,), jnp.float32),
        "ln_bias": 0.1 * jax.random.normal(k_be, (cout,), jnp.float32),
    }


if __name__ == "__main__":
    key = jax.random.PRNGKey(0)
    k_a, k_pa, k_b, k_pb = jax.random.split(key, 4)

    # --- Config A: layer_id>=1 style (Cin=Cout=32, K=3, S=2), ragged T_out ----
    B, C_IN, C_OUT, K, S = 2, 32, 32, 3, 2
    T_OUT = 300                                  # not a multiple of 128 -> ragged tile
    T = (T_OUT - 1) * S + K
    x_a = jax.random.normal(k_a, (B, C_IN, T), jnp.float32)
    params_a = _make_params(k_pa, C_IN, C_OUT, K)

    out_a = jax.block_until_ready(
        wavlm_layernorm_conv_layer(x_a, params_a, stride=S, tt=128))
    ref_a = reference(x_a, params_a, stride=S)
    assert out_a.shape == ref_a.shape == (B, C_OUT, T_OUT), (out_a.shape, ref_a.shape)
    err_a = float(jnp.max(jnp.abs(out_a - ref_a)))
    assert err_a < 5e-3, err_a

    # bf16-operand / f32-accumulation path (v6e/v7x MXU-native), checked against
    # the reference evaluated on bf16-rounded inputs/weights.
    out_bf16 = jax.block_until_ready(
        wavlm_layernorm_conv_layer(x_a, params_a, stride=S, tt=128,
                                   compute_dtype=jnp.bfloat16))
    x_q = x_a.astype(jnp.bfloat16).astype(jnp.float32)
    params_q = dict(params_a,
                    conv_weight=params_a["conv_weight"].astype(jnp.bfloat16)
                                                       .astype(jnp.float32))
    ref_q = reference(x_q, params_q, stride=S)
    err_bf16 = float(jnp.max(jnp.abs(out_bf16 - ref_q)))
    assert err_bf16 < 5e-3, err_bf16

    # --- Config B: layer_id==0 style (Cin=1, K=10, S=5), single tile ----------
    C_IN0, C_OUT0, K0, S0 = 1, 32, 10, 5
    T_OUT0 = 40
    T0 = (T_OUT0 - 1) * S0 + K0
    x_b = jax.random.normal(k_b, (B, C_IN0, T0), jnp.float32)
    params_b = _make_params(k_pb, C_IN0, C_OUT0, K0)

    out_b = jax.block_until_ready(
        wavlm_layernorm_conv_layer(x_b, params_b, stride=S0))
    ref_b = reference(x_b, params_b, stride=S0)
    assert out_b.shape == ref_b.shape == (B, C_OUT0, T_OUT0), (out_b.shape, ref_b.shape)
    err_b = float(jnp.max(jnp.abs(out_b - ref_b)))
    assert err_b < 5e-3, err_b

    print("KERNEL_OK")
</pallas_src>

<mosaic_0001>
module attributes {stable_mosaic.version = 11 : i64} {
  func.func @_conv_ln_gelu_kernel(%arg0: i32, %arg1: i32, %arg2: memref<1x1x2x32x129xf32, #tpu.memory_space<vmem>>, %arg3: memref<32x96xf32, #tpu.memory_space<vmem>>, %arg4: memref<32x1xf32, #tpu.memory_space<vmem>>, %arg5: memref<32x1xf32, #tpu.memory_space<vmem>>, %arg6: memref<32x1xf32, #tpu.memory_space<vmem>>, %arg7: memref<1x32x128xf32, #tpu.memory_space<vmem>>) attributes {dimension_semantics = [#tpu.dimension_semantics<parallel>, #tpu.dimension_semantics<parallel>], iteration_bounds = array<i64: 2, 3>, scalar_prefetch = 0 : i64, scratch_operands = 0 : i64, tpu.core_type = #tpu.core_type<tc>, window_params = [{transform_indices = @transform_0, window_bounds = array<i64: 1, 1, 2, 32, 129>}, {pipeline_mode = #tpu.pipeline_mode<synchronous>, transform_indices = @transform_1, window_bounds = array<i64: 32, 96>}, {pipeline_mode = #tpu.pipeline_mode<synchronous>, transform_indices = @transform_2, window_bounds = array<i64: 32, 1>}, {pipeline_mode = #tpu.pipeline_mode<synchronous>, transform_indices = @transform_3, window_bounds = array<i64: 32, 1>}, {pipeline_mode = #tpu.pipeline_mode<synchronous>, transform_indices = @transform_4, window_bounds = array<i64: 32, 1>}, {transform_indices = @transform_5, window_bounds = array<i64: 1, 32, 128>}]} {
    %c0 = arith.constant 0 : index
    %c0_0 = arith.constant 0 : index
    %c0_1 = arith.constant 0 : index
    %c0_2 = arith.constant 0 : index
    %c0_3 = arith.constant 0 : index
    %0 = vector.load %arg2[%c0, %c0_0, %c0_1, %c0_2, %c0_3] : memref<1x1x2x32x129xf32, #tpu.memory_space<vmem>>, vector<1x1x1x32x128xf32>
    %1 = vector.shape_cast %0 : vector<1x1x1x32x128xf32> to vector<32x128xf32>
    %c0_4 = arith.constant 0 : index
    %c0_5 = arith.constant 0 : index
    %c1 = arith.constant 1 : index
    %c0_6 = arith.constant 0 : index
    %c0_7 = arith.constant 0 : index
    %2 = vector.load %arg2[%c0_4, %c0_5, %c1, %c0_6, %c0_7] : memref<1x1x2x32x129xf32, #tpu.memory_space<vmem>>, vector<1x1x1x32x128xf32>
    %3 = vector.shape_cast %2 : vector<1x1x1x32x128xf32> to vector<32x128xf32>
    %c0_8 = arith.constant 0 : index
    %c0_9 = arith.constant 0 : index
    %c0_10 = arith.constant 0 : index
    %c0_11 = arith.constant 0 : index
    %c1_12 = arith.constant 1 : index
    %4 = vector.load %arg2[%c0_8, %c0_9, %c0_10, %c0_11, %c1_12] : memref<1x1x2x32x129xf32, #tpu.memory_space<vmem>>, vector<1x1x1x32x128xf32>
    %5 = vector.shape_cast %4 : vector<1x1x1x32x128xf32> to vector<32x128xf32>
    %6 = tpu.concatenate %1, %3, %5 in 0 : vector<32x128xf32>, vector<32x128xf32>, vector<32x128xf32> -> vector<96x128xf32>
    %c0_13 = arith.constant 0 : index
    %c0_14 = arith.constant 0 : index
    %7 = vector.load %arg3[%c0_13, %c0_14] : memref<32x96xf32, #tpu.memory_space<vmem>>, vector<32x96xf32>
    %cst = arith.constant dense<0.000000e+00> : vector<32x128xf32>
    %8 = tpu.matmul %7, %6, %cst {dimension_numbers = #tpu.dot_dimension_numbers<[1], [0], [0], [1], [0, 0, 1, 1], [], []>} : vector<32x96xf32>, vector<96x128xf32>, vector<32x128xf32> -> vector<32x128xf32>
    %c0_15 = arith.constant 0 : index
    %c0_16 = arith.constant 0 : index
    %9 = vector.load %arg4[%c0_15, %c0_16] : memref<32x1xf32, #tpu.memory_space<vmem>>, vector<32x1xf32>
    %10 = vector.broadcast %9 : vector<32x1xf32> to vector<32x128xf32>
    %11 = arith.addf %8, %10 : vector<32x128xf32>
    %cst_17 = arith.constant dense<0.000000e+00> : vector<128xf32>
    %12 = vector.multi_reduction <add>, %11, %cst_17 [0] : vector<32x128xf32> to vector<128xf32>
    %13 = vector.shape_cast %12 : vector<128xf32> to vector<1x128xf32>
    %cst_18 = arith.constant 3.200000e+01 : f32
    %14 = vector.broadcast %cst_18 : f32 to vector<1x128xf32>
    %15 = arith.divf %13, %14 : vector<1x128xf32>
    %16 = vector.broadcast %15 : vector<1x128xf32> to vector<32x128xf32>
    %17 = arith.subf %11, %16 : vector<32x128xf32>
    %18 = arith.mulf %17, %17 : vector<32x128xf32>
    %cst_19 = arith.constant dense<0.000000e+00> : vector<128xf32>
    %19 = vector.multi_reduction <add>, %18, %cst_19 [0] : vector<32x128xf32> to vector<128xf32>
    %20 = vector.shape_cast %19 : vector<128xf32> to vector<1x128xf32>
    %cst_20 = arith.constant 3.200000e+01 : f32
    %21 = vector.broadcast %cst_20 : f32 to vector<1x128xf32>
    %22 = arith.divf %20, %21 : vector<1x128xf32>
    %cst_21 = arith.constant 9.99999974E-6 : f32
    %23 = vector.broadcast %cst_21 : f32 to vector<1x128xf32>
    %24 = arith.addf %22, %23 : vector<1x128xf32>
    %25 = math.rsqrt %24 : vector<1x128xf32>
    %26 = vector.broadcast %25 : vector<1x128xf32> to vector<32x128xf32>
    %27 = arith.mulf %17, %26 : vector<32x128xf32>
    %c0_22 = arith.constant 0 : index
    %c0_23 = arith.constant 0 : index
    %28 = vector.load %arg5[%c0_22, %c0_23] : memref<32x1xf32, #tpu.memory_space<vmem>>, vector<32x1xf32>
    %29 = vector.broadcast %28 : vector<32x1xf32> to vector<32x128xf32>
    %30 = arith.mulf %27, %29 : vector<32x128xf32>
    %c0_24 = arith.constant 0 : index
    %c0_25 = arith.constant 0 : index
    %31 = vector.load %arg6[%c0_24, %c0_25] : memref<32x1xf32, #tpu.memory_space<vmem>>, vector<32x1xf32>
    %32 = vector.broadcast %31 : vector<32x1xf32> to vector<32x128xf32>
    %33 = arith.addf %30, %32 : vector<32x128xf32>
    %cst_26 = arith.constant 5.000000e-01 : f32
    %34 = vector.broadcast %cst_26 : f32 to vector<32x128xf32>
    %35 = arith.mulf %34, %33 : vector<32x128xf32>
    %cst_27 = arith.constant 0.707106769 : f32
    %36 = vector.broadcast %cst_27 : f32 to vector<32x128xf32>
    %37 = arith.mulf %33, %36 : vector<32x128xf32>
    %cst_28 = arith.constant 0.000000e+00 : f32
    %38 = vector.broadcast %cst_28 : f32 to vector<32x128xf32>
    %39 = arith.cmpf olt, %37, %38 : vector<32x128xf32>
    %cst_29 = arith.constant -1.000000e+00 : f32
    %cst_30 = arith.constant 1.000000e+00 : f32
    %40 = vector.broadcast %cst_29 : f32 to vector<32x128xf32>
    %41 = vector.broadcast %cst_30 : f32 to vector<32x128xf32>
    %42 = arith.select %39, %40, %41 : vector<32x128xi1>, vector<32x128xf32>
    %43 = math.absf %37 : vector<32x128xf32>
    %cst_31 = arith.constant 0.327591091 : f32
    %44 = vector.broadcast %cst_31 : f32 to vector<32x128xf32>
    %45 = arith.mulf %44, %43 : vector<32x128xf32>
    %cst_32 = arith.constant 1.000000e+00 : f32
    %46 = vector.broadcast %cst_32 : f32 to vector<32x128xf32>
    %47 = arith.addf %46, %45 : vector<32x128xf32>
    %cst_33 = arith.constant 1.000000e+00 : f32
    %48 = vector.broadcast %cst_33 : f32 to vector<32x128xf32>
    %49 = arith.divf %48, %47 : vector<32x128xf32>
    %cst_34 = arith.constant 1.06140542 : f32
    %50 = vector.broadcast %cst_34 : f32 to vector<32x128xf32>
    %51 = arith.mulf %50, %49 : vector<32x128xf32>
    %cst_35 = arith.constant -1.45315206 : f32
    %52 = vector.broadcast %cst_35 : f32 to vector<32x128xf32>
    %53 = arith.addf %51, %52 : vector<32x128xf32>
    %54 = arith.mulf %53, %49 : vector<32x128xf32>
    %cst_36 = arith.constant 1.42141378 : f32
    %55 = vector.broadcast %cst_36 : f32 to vector<32x128xf32>
    %56 = arith.addf %54, %55 : vector<32x128xf32>
    %57 = arith.mulf %56, %49 : vector<32x128xf32>
    %cst_37 = arith.constant -0.284496725 : f32
    %58 = vector.broadcast %cst_37 : f32 to vector<32x128xf32>
    %59 = arith.addf %57, %58 : vector<32x128xf32>
    %60 = arith.mulf %59, %49 : vector<32x128xf32>
    %cst_38 = arith.constant 0.254829586 : f32
    %61 = vector.broadcast %cst_38 : f32 to vector<32x128xf32>
    %62 = arith.addf %60, %61 : vector<32x128xf32>
    %63 = arith.mulf %62, %49 : vector<32x128xf32>
    %cst_39 = arith.constant 0.000000e+00 : f32
    %64 = vector.broadcast %cst_39 : f32 to vector<32x128xf32>
    %65 = arith.subf %64, %43 : vector<32x128xf32>
    %66 = arith.mulf %65, %43 : vector<32x128xf32>
    %67 = math.exp %66 : vector<32x128xf32>
    %68 = arith.mulf %63, %67 : vector<32x128xf32>
    %cst_40 = arith.constant 1.000000e+00 : f32
    %69 = vector.broadcast %cst_40 : f32 to vector<32x128xf32>
    %70 = arith.subf %69, %68 : vector<32x128xf32>
    %71 = arith.mulf %42, %70 : vector<32x128xf32>
    %cst_41 = arith.constant 1.000000e+00 : f32
    %72 = vector.broadcast %cst_41 : f32 to vector<32x128xf32>
    %73 = arith.addf %72, %71 : vector<32x128xf32>
    %74 = arith.mulf %35, %73 : vector<32x128xf32>
    %c0_42 = arith.constant 0 : index
    %c0_43 = arith.constant 0 : index
    %c0_44 = arith.constant 0 : index
    %75 = vector.load %arg7[%c0_42, %c0_43, %c0_44] : memref<1x32x128xf32, #tpu.memory_space<vmem>>, vector<1x32x128xf32>
    %76 = vector.shape_cast %75 : vector<1x32x128xf32> to vector<32x128xf32>
    %77 = vector.shape_cast %74 : vector<32x128xf32> to vector<1x32x128xf32>
    tpu.vector_store %arg7[%c0_42, %c0_43, %c0_44], %77 {strides = array<i32>} : memref<1x32x128xf32, #tpu.memory_space<vmem>>, vector<1x32x128xf32>,
    return
  }
  func.func @transform_0(%arg0: i32, %arg1: i32) -> (i32, i32, i32, i32, i32) {
    %c0_i32 = arith.constant 0 : i32
    %c0_i32_0 = arith.constant 0 : i32
    %c0_i32_1 = arith.constant 0 : i32
    %c0_i32_2 = arith.constant 0 : i32
    return %arg0, %arg1, %c0_i32, %c0_i32_0, %c0_i32_1 : i32, i32, i32, i32, i32
  }
  func.func @transform_1(%arg0: i32, %arg1: i32) -> (i32, i32) {
    %c0_i32 = arith.constant 0 : i32
    %c0_i32_0 = arith.constant 0 : i32
    %c0_i32_1 = arith.constant 0 : i32
    return %c0_i32, %c0_i32_0 : i32, i32
  }
  func.func @transform_2(%arg0: i32, %arg1: i32) -> (i32, i32) {
    %c0_i32 = arith.constant 0 : i32
    %c0_i32_0 = arith.constant 0 : i32
    %c0_i32_1 = arith.constant 0 : i32
    return %c0_i32, %c0_i32_0 : i32, i32
  }
  func.func @transform_3(%arg0: i32, %arg1: i32) -> (i32, i32) {
    %c0_i32 = arith.constant 0 : i32
    %c0_i32_0 = arith.constant 0 : i32
    %c0_i32_1 = arith.constant 0 : i32
    return %c0_i32, %c0_i32_0 : i32, i32
  }
  func.func @transform_4(%arg0: i32, %arg1: i32) -> (i32, i32) {
    %c0_i32 = arith.constant 0 : i32
    %c0_i32_0 = arith.constant 0 : i32
    %c0_i32_1 = arith.constant 0 : i32
    return %c0_i32, %c0_i32_0 : i32, i32
  }
  func.func @transform_5(%arg0: i32, %arg1: i32) -> (i32, i32, i32) {
    %c0_i32 = arith.constant 0 : i32
    %c0_i32_0 = arith.constant 0 : i32
    return %arg0, %c0_i32, %arg1 : i32, i32, i32
  }
}

</mosaic_0001>

<llo_original>
// kernel: tpu_custom_call.1
$region0: #{tpu_custom_call.1}
  #allocation0 [shape = 'u32[]', space=smem, size = 0x4, offset = 0x4, fixed_abs, tag = 'smem constant byte address 0x4 - core index']
  #allocation1 [shape = 'u32[144,128]{1,0:T(1,128)}', space=vmem, size = 0x12000, scoped, tag = 'internal scratch']
  %s0 = inlined_call_operand.hbm [shape: f32[2,3,2,32,129], index: 0, kind: input, shape index: {}]
  %s1 = inlined_call_operand.vmem [shape: f32[32,96], index: 1, kind: input, shape index: {}]
  %s2 = inlined_call_operand.vmem [shape: f32[32,1], index: 2, kind: input, shape index: {}]
  %s3 = inlined_call_operand.vmem [shape: f32[32,1], index: 3, kind: input, shape index: {}]
  %s4 = inlined_call_operand.vmem [shape: f32[32,1], index: 4, kind: input, shape index: {}]
  %s5 = inlined_call_operand.hbm [shape: f32[2,32,384], index: 5, kind: output, shape index: {}]
  %s6 = sld [smem:[#allocation0]]
  $region57: #{tpu_custom_call.1} parent=0
    _
  %s8 = ssub.s32 1, %s6
  %s9 = scalar_select 0, %s8, %s6
  $region1: #{tpu_custom_call.1} parent=0
    #allocation2 [shape = 'u8[131072]{0}', space=vmem, size = 0x20000, scoped, tag = 'input window, operand 0']
    #allocation3 [shape = 's32[2]{0}', space=sflag, size = 0x8, scoped, tag = 'scoped memory for tpu_custom_call.1']
    #allocation4 [shape = 's32[2]{0}', space=sflag, size = 0x8, scoped, tag = 'scoped memory for tpu_custom_call.1']
    #allocation5 [shape = 'u8[32768]{0}', space=vmem, size = 0x8000, scoped, tag = 'output window, operand 0']
    %10 = vsyncpa [#allocation3], 0
    %s11 = scalar_lea.sflag [#allocation3], 1
    %12 = vsyncpa %s11, 0
    %13 = vsyncpa [#allocation4], 0
    %s14 = scalar_lea.sflag [#allocation4], 1
    %15 = vsyncpa %s14, 0
    loop: start=0, step=1, limit=8
    $region2: #{tpu_custom_call.1} parent=1 // loop_pre_header
      _
    $region3: #{tpu_custom_call.1} parent=1 // loop_header
      %s17 = sphi 0, %s21
      %p18 = scmp.ge.s32.totalorder %s17, 8
      %s24 = sphi 0, %s36
      %s25 = sphi 0, %s32
      %s26 = sphi 0, %s24
      %s27 = sphi 0, %s25
      %s28 = sphi 0, %s26
      %s29 = sphi 0, %s27
      %s41 = sphi 0, %s43
      %s44 = sphi 0, %s41
      %s45 = sphi 0, %s44
      %s61 = sphi 0, %s45
      %s65 = sphi 0, %s65
      %s67 = sphi 0, %s65
      %s68 = sphi 0, %s67
      %s82 = sphi 0, %s68
      %s86 = sphi 0, %s86
      %s88 = sphi 0, %s86
      %s89 = sphi 0, %s88
      %s103 = sphi 0, %s89
      %s107 = sphi 0, %s107
      %s109 = sphi 0, %s107
      %s110 = sphi 0, %s109
      %s124 = sphi 0, %s110
      %s128 = sphi 0, %s128
      %s130 = sphi 0, %s128
      %s131 = sphi 0, %s130
      %s145 = sphi 0, %s131
      %s153 = sphi 0, %s155
      %s156 = sphi 0, %s153
      %s157 = sphi 0, %s156
      %s173 = sphi 0, %s157
    $region4: #{tpu_custom_call.1} parent=1 // loop_header_branch
      %20 = sbr.rel (%p18) target = $region8
    $region5: #{tpu_custom_call.1} parent=1 // loop_body
      %s22 = ssub.s32 %s17, 1
      %s23 = ssub.s32 %s17, 2
      %s30 = sadd.s32 1, %s25
      %p31 = scmp.ge.s32.totalorder %s30, 3
      %s32 = scalar_select %p31, 0, %s30
      %s33 = sadd.s32 1, %s24
      %s34 = scalar_select %p31, %s33, %s24
      %p35 = scmp.ge.s32.totalorder %s34, 2
      %s36 = scalar_select %p35, 0, %s34
      %s37 = ssub.s32 %s24, %s36
      %s38 = ssub.s32 %s25, %s32
      %s39 = sor.u32 %s37, %s38
      %p40 = scmp.eq.s32.totalorder %s39, 0
      %s42 = sadd.s32 %s41, 1
      %s43 = scalar_select %p40, %s41, %s42
      %p46 = pneg %p40
      %p47 = scmp.eq.s32.totalorder %s17, 5
      %p48 = por %p46, %p47
      %p49 = scmp.ne.s32.totalorder %s41, %s44
      %p50 = scmp.eq.s32.totalorder %s17, 0
      %p51 = por %p49, %p50
      %p52 = scmp.ne.s32.totalorder %s41, %s44
      %p53 = scmp.eq.s32.totalorder %s22, 5
      %p54 = por %p52, %p53
      %p55 = scmp.ne.s32.totalorder %s44, %s45
      %p56 = scmp.eq.s32.totalorder %s22, 0
      %p57 = por %p55, %p56
      %p58 = scmp.ne.s32.totalorder %s44, %s45
      %p59 = scmp.eq.s32.totalorder %s23, 5
      %p60 = por %p58, %p59
      %p62 = scmp.ne.s32.totalorder %s45, %s61
      %p63 = scmp.eq.s32.totalorder %s23, 0
      %p64 = por %p62, %p63
      %s66 = sadd.s32 %s65, 1
      %p69 = scmp.eq.s32.totalorder %s17, 5
      %p70 = scmp.ne.s32.totalorder %s65, %s67
      %p71 = scmp.eq.s32.totalorder %s17, 0
      %p72 = por %p70, %p71
      %p73 = scmp.ne.s32.totalorder %s65, %s67
      %p74 = scmp.eq.s32.totalorder %s22, 5
      %p75 = por %p73, %p74
      %p76 = scmp.ne.s32.totalorder %s67, %s68
      %p77 = scmp.eq.s32.totalorder %s22, 0
      %p78 = por %p76, %p77
      %p79 = scmp.ne.s32.totalorder %s67, %s68
      %p80 = scmp.eq.s32.totalorder %s23, 5
      %p81 = por %p79, %p80
      %p83 = scmp.ne.s32.totalorder %s68, %s82
      %p84 = scmp.eq.s32.totalorder %s23, 0
      %p85 = por %p83, %p84
      %s87 = sadd.s32 %s86, 1
      %p90 = scmp.eq.s32.totalorder %s17, 5
      %p91 = scmp.ne.s32.totalorder %s86, %s88
      %p92 = scmp.eq.s32.totalorder %s17, 0
      %p93 = por %p91, %p92
      %p94 = scmp.ne.s32.totalorder %s86, %s88
      %p95 = scmp.eq.s32.totalorder %s22, 5
      %p96 = por %p94, %p95
      %p97 = scmp.ne.s32.totalorder %s88, %s89
      %p98 = scmp.eq.s32.totalorder %s22, 0
      %p99 = por %p97, %p98
      %p100 = scmp.ne.s32.totalorder %s88, %s89
      %p101 = scmp.eq.s32.totalorder %s23, 5
      %p102 = por %p100, %p101
      %p104 = scmp.ne.s32.totalorder %s89, %s103
      %p105 = scmp.eq.s32.totalorder %s23, 0
      %p106 = por %p104, %p105
      %s108 = sadd.s32 %s107, 1
      %p111 = scmp.eq.s32.totalorder %s17, 5
      %p112 = scmp.ne.s32.totalorder %s107, %s109
      %p113 = scmp.eq.s32.totalorder %s17, 0
      %p114 = por %p112, %p113
      %p115 = scmp.ne.s32.totalorder %s107, %s109
      %p116 = scmp.eq.s32.totalorder %s22, 5
      %p117 = por %p115, %p116
      %p118 = scmp.ne.s32.totalorder %s109, %s110
      %p119 = scmp.eq.s32.totalorder %s22, 0
      %p120 = por %p118, %p119
      %p121 = scmp.ne.s32.totalorder %s109, %s110
      %p122 = scmp.eq.s32.totalorder %s23, 5
      %p123 = por %p121, %p122
      %p125 = scmp.ne.s32.totalorder %s110, %s124
      %p126 = scmp.eq.s32.totalorder %s23, 0
      %p127 = por %p125, %p126
      %s129 = sadd.s32 %s128, 1
      %p132 = scmp.eq.s32.totalorder %s17, 5
      %p133 = scmp.ne.s32.totalorder %s128, %s130
      %p134 = scmp.eq.s32.totalorder %s17, 0
      %p135 = por %p133, %p134
      %p136 = scmp.ne.s32.totalorder %s128, %s130
      %p137 = scmp.eq.s32.totalorder %s22, 5
      %p138 = por %p136, %p137
      %p139 = scmp.ne.s32.totalorder %s130, %s131
      %p140 = scmp.eq.s32.totalorder %s22, 0
      %p141 = por %p139, %p140
      %p142 = scmp.ne.s32.totalorder %s130, %s131
      %p143 = scmp.eq.s32.totalorder %s23, 5
      %p144 = por %p142, %p143
      %p146 = scmp.ne.s32.totalorder %s131, %s145
      %p147 = scmp.eq.s32.totalorder %s23, 0
      %p148 = por %p146, %p147
      %s149 = ssub.s32 %s24, %s36
      %s150 = ssub.s32 %s25, %s32
      %s151 = sor.u32 %s149, %s150
      %p152 = scmp.eq.s32.totalorder %s151, 0
      %s154 = sadd.s32 %s153, 1
      %s155 = scalar_select %p152, %s153, %s154
      %p158 = pneg %p152
      %p159 = scmp.eq.s32.totalorder %s17, 5
      %p160 = por %p158, %p159
      %p161 = scmp.ne.s32.totalorder %s153, %s156
      %p162 = scmp.eq.s32.totalorder %s17, 0
      %p163 = por %p161, %p162
      %p164 = scmp.ne.s32.totalorder %s153, %s156
      %p165 = scmp.eq.s32.totalorder %s22, 5
      %p166 = por %p164, %p165
      %p167 = scmp.ne.s32.totalorder %s156, %s157
      %p168 = scmp.eq.s32.totalorder %s22, 0
      %p169 = por %p167, %p168
      %p170 = scmp.ne.s32.totalorder %s156, %s157
      %p171 = scmp.eq.s32.totalorder %s23, 5
      %p172 = por %p170, %p171
      %p174 = scmp.ne.s32.totalorder %s157, %s173
      %p175 = scmp.eq.s32.totalorder %s23, 0
      %p176 = por %p174, %p175
      %p177 = scmp.le.s32.totalorder 1, %s17
      %p178 = scmp.lt.s32.totalorder %s17, 7
      %p179 = pnand %p177, %p178
      %p180 = pneg %p179
      // Predicated region
      $region9: #{tpu_custom_call.1} parent=5 // pred_check
        _
      $region10: #{tpu_custom_call.1} parent=5 // pred_check_branch
        %182 = sbr.rel (%p179) target = $region12
      $region11: #{tpu_custom_call.1} parent=5 // pred_region
        %s183 = ssub.s32 %s17, 1
        // Predicated region
        $region13: #{tpu_custom_call.1} parent=11 // pred_check
          %p184 = pneg %p78
        $region14: #{tpu_custom_call.1} parent=11 // pred_check_branch
          %186 = sbr.rel (%p184) target = $region16
        $region15: #{tpu_custom_call.1} parent=11 // pred_region
          _
        $region16: #{tpu_custom_call.1} parent=11 // pred_fallthru
          _
        // Predicated region
        $region17: #{tpu_custom_call.1} parent=11 // pred_check
          %p187 = pneg %p99
        $region18: #{tpu_custom_call.1} parent=11 // pred_check_branch
          %189 = sbr.rel (%p187) target = $region20
        $region19: #{tpu_custom_call.1} parent=11 // pred_region
          _
        $region20: #{tpu_custom_call.1} parent=11 // pred_fallthru
          _
        // Predicated region
        $region21: #{tpu_custom_call.1} parent=11 // pred_check
          %p190 = pneg %p120
        $region22: #{tpu_custom_call.1} parent=11 // pred_check_branch
          %192 = sbr.rel (%p190) target = $region24
        $region23: #{tpu_custom_call.1} parent=11 // pred_region
          _
        $region24: #{tpu_custom_call.1} parent=11 // pred_fallthru
          _
        // Predicated region
        $region25: #{tpu_custom_call.1} parent=11 // pred_check
          %p193 = pneg %p141
        $region26: #{tpu_custom_call.1} parent=11 // pred_check_branch
          %195 = sbr.rel (%p193) target = $region28
        $region27: #{tpu_custom_call.1} parent=11 // pred_region
          _
        $region28: #{tpu_custom_call.1} parent=11 // pred_fallthru
          _
      $region12: #{tpu_custom_call.1} parent=5 // pred_fallthru
        _
      %p196 = scmp.lt.s32.totalorder %s17, 6
      // Predicated region
      $region29: #{tpu_custom_call.1} parent=5 // pred_check
        %p197 = pneg %p196
      $region30: #{tpu_custom_call.1} parent=5 // pred_check_branch
        %199 = sbr.rel (%p197) target = $region32
      $region31: #{tpu_custom_call.1} parent=5 // pred_region
        // Predicated region
        $region33: #{tpu_custom_call.1} parent=31 // pred_check
          %p200 = pneg %p51
        $region34: #{tpu_custom_call.1} parent=31 // pred_check_branch
          %202 = sbr.rel (%p200) target = $region36
        $region35: #{tpu_custom_call.1} parent=31 // pred_region
          %s203 = sand.u32 %s41, 1
          %s204 = scalar_lea.sflag [#allocation3], %s203
          %s205 = sand.u32 %s41, 1
          %s206 = smul.addr %s205, 128
          %s207 = scalar_lea.vmem [#allocation2], %s206
          %s209 = ssub.s32 2048, 2048
          %210 = vsyncadd %s204, %s209
          %s211 = smul.addr %s25, 16
          %s212 = smul.addr %s24, 48
          %s213 = sadd.s32 %s211, %s212
          %s214 = smul.addr %s213, 128
          %s215 = scalar_lea.hbm %s0, %s214
          %s216 = sshll.u32 %s207, 4
          %s217 = int_to_ptr.vmem [resolvable:$true] %s216
          %222 = dma.hbm_to_vmem [thread:$0]  %s215, 2048, %s217, %s204, 256, 256, 16
        $region36: #{tpu_custom_call.1} parent=31 // pred_fallthru
          _
      $region32: #{tpu_custom_call.1} parent=5 // pred_fallthru
        _
      %p223 = scmp.le.s32.totalorder 1, %s17
      %p224 = scmp.lt.s32.totalorder %s17, 7
      %p225 = pnand %p223, %p224
      %p226 = pneg %p225
      // Predicated region
      $region37: #{tpu_custom_call.1} parent=5 // pred_check
        _
      $region38: #{tpu_custom_call.1} parent=5 // pred_check_branch
        %228 = sbr.rel (%p225) target = $region40
      $region39: #{tpu_custom_call.1} parent=5 // pred_region
        %s229 = ssub.s32 %s17, 1
        %s230 = sand.u32 %s44, 1
        %s231 = scalar_lea.sflag [#allocation3], %s230
        %s232 = sand.u32 %s44, 1
        %s233 = smul.addr %s232, 128
        %s234 = scalar_lea.vmem [#allocation2], %s233
        // Predicated region
        $region41: #{tpu_custom_call.1} parent=39 // pred_check
          %p235 = pneg %p57
        $region42: #{tpu_custom_call.1} parent=39 // pred_check_branch
          %237 = sbr.rel (%p235) target = $region44
        $region43: #{tpu_custom_call.1} parent=39 // pred_region
          %238 = dma.done %s231, 2048
        $region44: #{tpu_custom_call.1} parent=39 // pred_fallthru
          _
        %s239 = sand.u32 %s44, 1
        %s240 = scalar_lea.sflag [#allocation3], %s239
        %s241 = sand.u32 %s44, 1
        %s242 = smul.addr %s241, 128
        %s243 = scalar_lea.vmem [#allocation2], %s242
        %p244 = pneg %p57
        %p245 = pneg %p54
        %p246 = pneg %p78
        %p247 = pneg %p75
        %p248 = pneg %p99
        %p249 = pneg %p96
        %p250 = pneg %p120
        %p251 = pneg %p117
        %p252 = pneg %p141
        %p253 = pneg %p138
        %p254 = pneg %p169
        %p255 = pneg %p166
        %s256 = sand.u32 %s156, 1
        %s257 = scalar_lea.sflag [#allocation4], %s256
        %s258 = sand.u32 %s156, 1
        %s259 = smul.addr %s258, 32
        %s260 = scalar_lea.vmem [#allocation5], %s259
        %v261 = vld [vmem:[%s234] sm:$0xff]
        %v262 = vld [vmem:[%s234 + $0x10] sm:$0xff]
        %v263 = vld [vmem:[%s234 + $0x20] sm:$0xff]
        %v264 = vld [vmem:[%s234 + $0x30] sm:$0xff]
        %s265 = scalar_lea.vmem %s234, 64 [#allocation2]
        %v266 = vld [vmem:[%s265] sm:$0xff]
        %v267 = vld [vmem:[%s265 + $0x10] sm:$0xff]
        %v268 = vld [vmem:[%s265 + $0x20] sm:$0xff]
        %v269 = vld [vmem:[%s265 + $0x30] sm:$0xff]
        %v270 = vld [vmem:[%s234 + $0x8] sm:$0xff]
        %v271 = vld [vmem:[%s234 + $0x18] sm:$0xff]
        %v272 = vld [vmem:[%s234 + $0x28] sm:$0xff]
        %v273 = vld [vmem:[%s234 + $0x38] sm:$0xff]
        %282 = vrot.lane.b32.xlu0 %v261, 127
        %v283 = vpop.permute.xlu0 %282
        %284 = vrot.lane.b32.xlu0 %v270, 127
        %v285 = vpop.permute.xlu0 %284
        %286 = vrot.lane.b32.xlu0 %v262, 127
        %v287 = vpop.permute.xlu0 %286
        %288 = vrot.lane.b32.xlu0 %v271, 127
        %v289 = vpop.permute.xlu0 %288
        %290 = vrot.lane.b32.xlu0 %v263, 127
        %v291 = vpop.permute.xlu0 %290
        %292 = vrot.lane.b32.xlu0 %v272, 127
        %v293 = vpop.permute.xlu0 %292
        %294 = vrot.lane.b32.xlu0 %v264, 127
        %v295 = vpop.permute.xlu0 %294
        %296 = vrot.lane.b32.xlu0 %v273, 127
        %v297 = vpop.permute.xlu0 %296
        %vm298 = vcmask 1039360
        %v299 = vsel %vm298, %v283, %v285
        %v300 = vsel %vm298, %v287, %v289
        %v301 = vsel %vm298, %v291, %v293
        %v302 = vsel %vm298, %v295, %v297
        %v307 = vld [vmem:[%s1] sm:$0xff]
        %v308 = vld [vmem:[%s1 + $0x8] sm:$0xff]
        %v309 = vld [vmem:[%s1 + $0x10] sm:$0xff]
        %v310 = vld [vmem:[%s1 + $0x18] sm:$0xff]
        %v311 = vld [vmem:[%s2] sm:$0xff]
        %v312 = vld [vmem:[%s2 + $0x8] sm:$0xff]
        %v313 = vld [vmem:[%s2 + $0x10] sm:$0xff]
        %v314 = vld [vmem:[%s2 + $0x18] sm:$0xff]
        %316 = vset.pattern.permute.xlu0 0
        %317 = vperm.xlu0 %316, %v311
        %v318 = vpop.permute.xlu0 %317
        %321 = vset.pattern.permute.xlu0 0
        %322 = vperm.xlu0 %321, %v312
        %v323 = vpop.permute.xlu0 %322
        %326 = vset.pattern.permute.xlu0 0
        %327 = vperm.xlu0 %326, %v313
        %v328 = vpop.permute.xlu0 %327
        %331 = vset.pattern.permute.xlu0 0
        %332 = vperm.xlu0 %331, %v314
        %v333 = vpop.permute.xlu0 %332
        %vm335 = vcmask 785408
        %v337 = vsel %vm335, %v307, 0
        %v340 = vsel %vm335, %v308, 0
        %v343 = vsel %vm335, %v309, 0
        %v346 = vsel %vm335, %v310, 0
        %348 = vmatprep.subr.mxu0 0.0
        %349 = vmatpush1.msra.mxu0 %v261
        %350 = vmatprep.subr.mxu0 0.0
        %351 = vmatpush1.msra.mxu0 %v262
        %352 = vmatprep.subr.mxu0 0.0
        %353 = vmatpush1.msra.mxu0 %v263
        %354 = vmatprep.subr.mxu0 0.0
        %355 = vmatpush1.msra.mxu0 %v264
        %356 = vmatprep.subr.mxu0 0.0
        %357 = vmatpush1.msra.mxu0 %v266
        %358 = vmatprep.subr.mxu0 0.0
        %359 = vmatpush1.msra.mxu0 %v267
        %360 = vmatprep.subr.mxu0 0.0
        %361 = vmatpush1.msra.mxu0 %v268
        %362 = vmatprep.subr.mxu0 0.0
        %363 = vmatpush1.msra.mxu0 %v269
        %364 = vmatprep.subr.mxu0 0.0
        %365 = vmatpush1.msra.mxu0 %v299
        %366 = vmatprep.subr.mxu0 0.0
        %367 = vmatpush1.msra.mxu0 %v300
        %368 = vmatprep.subr.mxu0 0.0
        %369 = vmatpush1.msra.mxu0 %v301
        %370 = vmatprep.subr.mxu0 0.0
        %371 = vmatpush1.msra.mxu0 %v302
        %372 = vmatprep.subr.mxu0 0.0
        %373 = vmatpush1.msra.mxu0 0.0
        %374 = vmatprep.subr.mxu0 0.0
        %375 = vmatpush1.msra.mxu0 0.0
        %376 = vmatprep.subr.mxu0 0.0
        %377 = vmatpush1.msra.mxu0 0.0
        %378 = vmatprep.subr.mxu0 0.0
        %379 = vmatpush1.msra.mxu0 0.0
        %380 = vmatprep.subr.mxu0 0.0
        %381 = vmatpush1.msra.mxu0 0.0
        %382 = vmatprep.subr.mxu0 0.0
        %383 = vmatpush1.msra.mxu0 0.0
        %384 = vmatprep.subr.mxu0 0.0
        %385 = vmatpush1.msra.mxu0 0.0
        %386 = vmatprep.subr.mxu0 0.0
        %387 = vmatpush1.msra.mxu0 0.0
        %388 = vmatprep.subr.mxu0 0.0
        %389 = vmatpush1.msra.mxu0 0.0
        %390 = vmatprep.subr.mxu0 0.0
        %391 = vmatpush1.msra.mxu0 0.0
        %392 = vmatprep.subr.mxu0 0.0
        %393 = vmatpush1.msra.mxu0 0.0
        %394 = vmatprep.subr.mxu0 0.0
        %395 = vmatpush1.msra.mxu0 0.0
        %396 = vmatprep.subr.mxu0 0.0
        %397 = vmatpush1.msra.mxu0 0.0
        %398 = vmatprep.subr.mxu0 0.0
        %399 = vmatpush1.msra.mxu0 0.0
        %400 = vmatprep.subr.mxu0 0.0
        %401 = vmatpush1.msra.mxu0 0.0
        %402 = vmatprep.subr.mxu0 0.0
        %403 = vmatpush1.msra.mxu0 0.0
        %404 = vmatprep.subr.mxu0 0.0
        %405 = vmatpush1.msra.mxu0 0.0
        %406 = vmatprep.subr.mxu0 0.0
        %407 = vmatpush1.msra.mxu0 0.0
        %408 = vmatprep.subr.mxu0 0.0
        %409 = vmatpush1.msra.mxu0 0.0
        %410 = vmatprep.subr.mxu0 0.0
        %411 = vmatpush1.msra.mxu0 0.0
        %412 = vmatprep.mubr.f32.mxu0 0.0
        %413 = vmatmul.mubr.f32.gmra.mrb[0].mxu0 %v337
        %v414 = vpop.f32.mrb[0].mxu0
        %v415 = vadd.f32 %v318, %v414
        %v416 = vpop.f32.mrb[0].mxu0
        %417 = vmatprep.mubr.f32.mxu0 0.0
        %418 = vmatmul.mubr.f32.gmra.mrb[0].mxu0 %v340
        %v419 = vpop.f32.mrb[0].mxu0
        %v420 = vadd.f32 %v323, %v419
        %v421 = vpop.f32.mrb[0].mxu0
        %422 = vmatprep.mubr.f32.mxu0 0.0
        %423 = vmatmul.mubr.f32.gmra.mrb[0].mxu0 %v343
        %v424 = vpop.f32.mrb[0].mxu0
        %v425 = vadd.f32 %v328, %v424
        %v426 = vpop.f32.mrb[0].mxu0
        %427 = vmatprep.mubr.f32.mxu0 0.0
        %428 = vmatmul.mubr.f32.gmra.mrb[0].mxu0 %v346
        %v429 = vpop.f32.mrb[0].mxu0
        %v430 = vadd.f32 %v333, %v429
        %v431 = vpop.f32.mrb[0].mxu0
        %432 = vdwg.mxu0
        %v433 = vadd.f32 %v415, %v420
        %v434 = vadd.f32 %v433, %v425
        %v435 = vadd.f32 %v434, %v430
        %v436 = vrot.slane %v435, 4
        %v437 = vadd.f32 %v435, %v436
        %v438 = vrot.slane %v437, 2
        %v439 = vadd.f32 %v437, %v438
        %v440 = vrot.slane %v439, 1
        %v441 = vadd.f32 %v439, %v440
        %v442 = vrcp.pop 32.0
        %v443 = vmul.f32 %v441, %v442
        %v444 = vsub.f32 %v415, %v443
        %v445 = vsub.f32 %v420, %v443
        %v446 = vsub.f32 %v425, %v443
        %v447 = vsub.f32 %v430, %v443
        %v448 = vmul.f32 %v444, %v444
        %v449 = vmul.f32 %v445, %v445
        %v450 = vmul.f32 %v446, %v446
        %v451 = vmul.f32 %v447, %v447
        %v452 = vadd.f32 %v448, %v449
        %v453 = vadd.f32 %v452, %v450
        %v454 = vadd.f32 %v453, %v451
        %v455 = vrot.slane %v454, 4
        %v456 = vadd.f32 %v454, %v455
        %v457 = vrot.slane %v456, 2
        %v458 = vadd.f32 %v456, %v457
        %v459 = vrot.slane %v458, 1
        %v460 = vadd.f32 %v458, %v459
        %v461 = vmul.f32 %v460, %v442
        %v462 = vadd.f32 %v461, 1e-05
        %v463 = vrsqrt.pop %v462
        %v464 = vmul.f32 %v444, %v463
        %v465 = vmul.f32 %v445, %v463
        %v466 = vmul.f32 %v446, %v463
        %v467 = vmul.f32 %v447, %v463
        %v468 = vld [vmem:[%s3] sm:$0xff]
        %v469 = vld [vmem:[%s3 + $0x8] sm:$0xff]
        %v470 = vld [vmem:[%s3 + $0x10] sm:$0xff]
        %v471 = vld [vmem:[%s3 + $0x18] sm:$0xff]
        %473 = vset.pattern.permute.xlu0 0
        %474 = vperm.xlu0 %473, %v468
        %v475 = vpop.permute.xlu0 %474
        %478 = vset.pattern.permute.xlu0 0
        %479 = vperm.xlu0 %478, %v469
        %v480 = vpop.permute.xlu0 %479
        %483 = vset.pattern.permute.xlu0 0
        %484 = vperm.xlu0 %483, %v470
        %v485 = vpop.permute.xlu0 %484
        %488 = vset.pattern.permute.xlu0 0
        %489 = vperm.xlu0 %488, %v471
        %v490 = vpop.permute.xlu0 %489
        %v492 = vmul.f32 %v464, %v475
        %v493 = vmul.f32 %v465, %v480
        %v494 = vmul.f32 %v466, %v485
        %v495 = vmul.f32 %v467, %v490
        %v496 = vld [vmem:[%s4] sm:$0xff]
        %v497 = vld [vmem:[%s4 + $0x8] sm:$0xff]
        %v498 = vld [vmem:[%s4 + $0x10] sm:$0xff]
        %v499 = vld [vmem:[%s4 + $0x18] sm:$0xff]
        %501 = vset.pattern.permute.xlu0 0
        %502 = vperm.xlu0 %501, %v496
        %v503 = vpop.permute.xlu0 %502
        %506 = vset.pattern.permute.xlu0 0
        %507 = vperm.xlu0 %506, %v497
        %v508 = vpop.permute.xlu0 %507
        %511 = vset.pattern.permute.xlu0 0
        %512 = vperm.xlu0 %511, %v498
        %v513 = vpop.permute.xlu0 %512
        %516 = vset.pattern.permute.xlu0 0
        %517 = vperm.xlu0 %516, %v499
        %v518 = vpop.permute.xlu0 %517
        %v520 = vadd.f32 %v492, %v503
        %v521 = vadd.f32 %v493, %v508
        %v522 = vadd.f32 %v494, %v513
        %v523 = vadd.f32 %v495, %v518
        %v524 = vmul.f32 %v520, 0.5
        %v525 = vmul.f32 %v521, 0.5
        %v526 = vmul.f32 %v522, 0.5
        %v527 = vmul.f32 %v523, 0.5
        %v528 = vmul.f32 %v520, 0.70710677
        %v529 = vmul.f32 %v521, 0.70710677
        %v530 = vmul.f32 %v522, 0.70710677
        %v531 = vmul.f32 %v523, 0.70710677
        %vm532 = vcmp.lt.f32.partialorder %v528, 0.0
        %vm533 = vcmp.lt.f32.partialorder %v529, 0.0
        %vm534 = vcmp.lt.f32.partialorder %v530, 0.0
        %vm535 = vcmp.lt.f32.partialorder %v531, 0.0
        %v536 = vsel %vm532, -1.0, 1.0
        %v537 = vsel %vm533, -1.0, 1.0
        %v538 = vsel %vm534, -1.0, 1.0
        %v539 = vsel %vm535, -1.0, 1.0
        %v540 = vand.u32 2147483647, %v528
        %v541 = vand.u32 2147483647, %v529
        %v542 = vand.u32 2147483647, %v530
        %v543 = vand.u32 2147483647, %v531
        %v544 = vmul.f32 %v540, 0.3275911
        %v545 = vmul.f32 %v541, 0.3275911
        %v546 = vmul.f32 %v542, 0.3275911
        %v547 = vmul.f32 %v543, 0.3275911
        %v548 = vadd.f32 %v544, 1.0
        %v549 = vadd.f32 %v545, 1.0
        %v550 = vadd.f32 %v546, 1.0
        %v551 = vadd.f32 %v547, 1.0
        %v552 = vrcp.pop %v548
        %v553 = vmul.f32 1.0, %v552
        %v554 = vrcp.pop %v549
        %v555 = vmul.f32 1.0, %v554
        %v556 = vrcp.pop %v550
        %v557 = vmul.f32 1.0, %v556
        %v558 = vrcp.pop %v551
        %v559 = vmul.f32 1.0, %v558
        %v560 = vmul.f32 %v553, 1.0614054
        %v561 = vmul.f32 %v555, 1.0614054
        %v562 = vmul.f32 %v557, 1.0614054
        %v563 = vmul.f32 %v559, 1.0614054
        %v564 = vadd.f32 %v560, -1.4531521
        %v565 = vadd.f32 %v561, -1.4531521
        %v566 = vadd.f32 %v562, -1.4531521
        %v567 = vadd.f32 %v563, -1.4531521
        %v568 = vmul.f32 %v564, %v553
        %v569 = vmul.f32 %v565, %v555
        %v570 = vmul.f32 %v566, %v557
        %v571 = vmul.f32 %v567, %v559
        %v572 = vadd.f32 %v568, 1.4214138
        %v573 = vadd.f32 %v569, 1.4214138
        %v574 = vadd.f32 %v570, 1.4214138
        %v575 = vadd.f32 %v571, 1.4214138
        %v576 = vmul.f32 %v572, %v553
        %v577 = vmul.f32 %v573, %v555
        %v578 = vmul.f32 %v574, %v557
        %v579 = vmul.f32 %v575, %v559
        %v580 = vadd.f32 %v576, -0.28449672
        %v581 = vadd.f32 %v577, -0.28449672
        %v582 = vadd.f32 %v578, -0.28449672
        %v583 = vadd.f32 %v579, -0.28449672
        %v584 = vmul.f32 %v580, %v553
        %v585 = vmul.f32 %v581, %v555
        %v586 = vmul.f32 %v582, %v557
        %v587 = vmul.f32 %v583, %v559
        %v588 = vadd.f32 %v584, 0.2548296
        %v589 = vadd.f32 %v585, 0.2548296
        %v590 = vadd.f32 %v586, 0.2548296
        %v591 = vadd.f32 %v587, 0.2548296
        %v592 = vmul.f32 %v588, %v553
        %v593 = vmul.f32 %v589, %v555
        %v594 = vmul.f32 %v590, %v557
        %v595 = vmul.f32 %v591, %v559
        %v596 = vsub.f32 0.0, %v540
        %v597 = vsub.f32 0.0, %v541
        %v598 = vsub.f32 0.0, %v542
        %v599 = vsub.f32 0.0, %v543
        %v600 = vmul.f32 %v596, %v540
        %v601 = vmul.f32 %v597, %v541
        %v602 = vmul.f32 %v598, %v542
        %v603 = vmul.f32 %v599, %v543
        %v604 = vmul.f32 %v600, 1.442695
        %v605 = vpow.pop %v604
        %v606 = vmul.f32 %v601, 1.442695
        %v607 = vpow.pop %v606
        %v608 = vmul.f32 %v602, 1.442695
        %v609 = vpow.pop %v608
        %v610 = vmul.f32 %v603, 1.442695
        %v611 = vpow.pop %v610
        %v612 = vmul.f32 %v592, %v605
        %v613 = vmul.f32 %v593, %v607
        %v614 = vmul.f32 %v594, %v609
        %v615 = vmul.f32 %v595, %v611
        %v616 = vsub.f32 1.0, %v612
        %v617 = vsub.f32 1.0, %v613
        %v618 = vsub.f32 1.0, %v614
        %v619 = vsub.f32 1.0, %v615
        %v620 = vmul.f32 %v536, %v616
        %v621 = vmul.f32 %v537, %v617
        %v622 = vmul.f32 %v538, %v618
        %v623 = vmul.f32 %v539, %v619
        %v624 = vadd.f32 %v620, 1.0
        %v625 = vadd.f32 %v621, 1.0
        %v626 = vadd.f32 %v622, 1.0
        %v627 = vadd.f32 %v623, 1.0
        %v628 = vmul.f32 %v524, %v624
        %v629 = vmul.f32 %v525, %v625
        %v630 = vmul.f32 %v526, %v626
        %v631 = vmul.f32 %v527, %v627
        %632 = vst [vmem:[%s260] sm:$0xff] %v628
        %633 = vst [vmem:[%s260 + $0x8] sm:$0xff] %v629
        %634 = vst [vmem:[%s260 + $0x10] sm:$0xff] %v630
        %635 = vst [vmem:[%s260 + $0x18] sm:$0xff] %v631
        %s636 = sand.u32 %s156, 1
        %s637 = scalar_lea.sflag [#allocation4], %s636
        %s638 = sand.u32 %s156, 1
        %s639 = smul.addr %s638, 32
        %s640 = scalar_lea.vmem [#allocation5], %s639
        // Predicated region
        $region45: #{tpu_custom_call.1} parent=39 // pred_check
          %p641 = pneg %p166
        $region46: #{tpu_custom_call.1} parent=39 // pred_check_branch
          %643 = sbr.rel (%p641) target = $region48
        $region47: #{tpu_custom_call.1} parent=39 // pred_region
          %s645 = ssub.s32 512, 512
          %646 = vsyncadd %s637, %s645
          %s647 = smul.addr %s26, 12
          %s648 = sadd.s32 %s27, %s647
          %s649 = smul.addr %s648, 128
          %s650 = scalar_lea.hbm %s5, %s649
          %s651 = sshll.u32 %s640, 4
          %s652 = int_to_ptr.vmem [resolvable:$true] %s651
          %657 = dma.vmem_to_hbm [thread:$0]  %s652, 512, %s650, %s637, 128, 384, 8
        $region48: #{tpu_custom_call.1} parent=39 // pred_fallthru
          _
      $region40: #{tpu_custom_call.1} parent=5 // pred_fallthru
        _
      %p658 = scmp.le.s32.totalorder 2, %s17
      // Predicated region
      $region49: #{tpu_custom_call.1} parent=5 // pred_check
        %p659 = pneg %p658
      $region50: #{tpu_custom_call.1} parent=5 // pred_check_branch
        %661 = sbr.rel (%p659) target = $region52
      $region51: #{tpu_custom_call.1} parent=5 // pred_region
        %s662 = ssub.s32 %s17, 2
        // Predicated region
        $region53: #{tpu_custom_call.1} parent=51 // pred_check
          %p663 = pneg %p172
        $region54: #{tpu_custom_call.1} parent=51 // pred_check_branch
          %665 = sbr.rel (%p663) target = $region56
        $region55: #{tpu_custom_call.1} parent=51 // pred_region
          %s666 = sand.u32 %s157, 1
          %s667 = scalar_lea.sflag [#allocation4], %s666
          %s668 = sand.u32 %s157, 1
          %s669 = smul.addr %s668, 32
          %s670 = scalar_lea.vmem [#allocation5], %s669
          %671 = dma.done %s667, 512
        $region56: #{tpu_custom_call.1} parent=51 // pred_fallthru
          _
      $region52: #{tpu_custom_call.1} parent=5 // pred_fallthru
        _
    $region6: #{tpu_custom_call.1} parent=1 // loop_footer
      %s21 = sadd.s32 1, %s17
    $region7: #{tpu_custom_call.1} parent=1 // loop_footer_branch
      %16 = sbr.rel target = $region3
    $region8: #{tpu_custom_call.1} parent=1 // loop_exit
      _
    %672 = vsyncpa [#allocation3], 1
    %s673 = scalar_lea.sflag [#allocation3], 1
    %674 = vsyncpa %s673, 1
    %675 = vsyncpa [#allocation4], 1
    %s676 = scalar_lea.sflag [#allocation4], 1
    %677 = vsyncpa %s676, 1

</llo_original>
